<compile_context>
chip_gen: v6e
topology: v6e:2x2x1
jax: 0.10.0
libtpu: 0.0.40
codegen_flags: <defaults>
</compile_context>

<pallas_src>
import functools

import jax
import jax.numpy as jnp
from jax.experimental import pallas as pl
from jax.experimental.pallas import tpu as pltpu

_LANE = 128
_SUBLANE = 8


def _round_up(x, m):
    return ((x + m - 1) // m) * m


def _cdiv(a, b):
    return (a + b - 1) // b


# ----------------------------------------------------------------------------
# One-time parameter packing (init-time, NOT on the per-step path).
# ----------------------------------------------------------------------------
def pack_fgu_params(wa, ba, wt, bt, wc, bc, *, compute_dtype=jnp.float32):
    """Pad / pre-sum / cast the Fused_Gated_Unit parameters once.

    wa, wt : [Din, Dout]   (nn.Linear weights pre-transposed to [in, out])
    wc     : [Dout, Dout]
    ba, bt, bc : [Dout]
    """
    Din, Dout = wa.shape
    Dp = _round_up(Dout, _LANE)          # lane-dense output width
    pad_n = Dp - Dout

    b_in = (ba + bt).reshape(1, Dout).astype(jnp.float32)
    bc2 = bc.reshape(1, Dout).astype(jnp.float32)
    if pad_n:
        # Zero-padded weight columns/rows and zero biases guarantee that the
        # padded output columns are exactly 0 (sliced off by the wrapper).
        wa = jnp.pad(wa, ((0, 0), (0, pad_n)))
        wt = jnp.pad(wt, ((0, 0), (0, pad_n)))
        b_in = jnp.pad(b_in, ((0, 0), (0, pad_n)))
        wc = jnp.pad(wc, ((0, pad_n), (0, pad_n)))
        bc2 = jnp.pad(bc2, ((0, 0), (0, pad_n)))

    return dict(
        wa=wa.astype(compute_dtype),
        wt=wt.astype(compute_dtype),
        b_in=b_in,                       # biases stay f32
        wc=wc.astype(compute_dtype),
        bc=bc2,
        din=Din,
        dout=Dout,
        dp=Dp,
        compute_dtype=jnp.dtype(compute_dtype),
    )


# ----------------------------------------------------------------------------
# Kernel
# ----------------------------------------------------------------------------
def _fgu_kernel(a_ref, t_ref, wa_ref, wt_ref, b_in_ref, wc_ref, bc_ref,
                o_ref, y_ref, *, ep_dtype):
    j = pl.program_id(1)                 # gating-weight N tile (inner axis)
    tn = o_ref.shape[-1]

    # Stage 1: fused audio+text projection, computed ONCE per batch tile into
    # the f32 VMEM scratch and reused for every N tile.
    @pl.when(j == 0)
    def _():
        y = jnp.dot(a_ref[...], wa_ref[...], preferred_element_type=jnp.float32)
        y = y + jnp.dot(t_ref[...], wt_ref[...],
                        preferred_element_type=jnp.float32)
        y_ref[...] = y + b_in_ref[...]

    # Stage 2: context gating.  glu(cat([y, z], 1), 1) == y * sigmoid(z).
    # NOTE: in bf16 mode the gating-matmul LHS is a bf16 downcast of the
    # f32-accumulated y (intentional quantization of the gate input).
    y_full = y_ref[...]
    z = jnp.dot(y_full.astype(wc_ref.dtype), wc_ref[...],
                preferred_element_type=jnp.float32)
    z = z + bc_ref[...]

    col0 = pl.multiple_of(j * tn, tn)    # tn is a multiple of 128
    y_tile = y_ref[:, pl.ds(col0, tn)]
    gate = jax.nn.sigmoid(z.astype(ep_dtype))
    o_ref[...] = (y_tile.astype(ep_dtype) * gate).astype(o_ref.dtype)


# ----------------------------------------------------------------------------
# Wrapper
# ----------------------------------------------------------------------------
def fused_gated_unit(audio, text, params, *, block_b=512, block_n=512,
                     out_dtype=jnp.float32, epilogue_dtype=jnp.float32):
    """Fused_Gated_Unit forward.

    audio, text : [B, Din]
    params      : output of pack_fgu_params (packed once at init)
    Returns [B, Dout] in `out_dtype`.

    v5e hint: compute_dtype=bf16 at pack time + block_b=128 if VMEM-tight.
    v6e/v7x hint: epilogue_dtype/out_dtype=bf16 halve EUP + writeback cost.
    """
    B, Din = audio.shape
    assert text.shape == (B, Din)
    assert Din == params["din"]
    Dout, Dp = params["dout"], params["dp"]
    cdt = params["compute_dtype"]

    # --- balanced batch tiling: minimize padded rows --------------------------
    n_b = max(1, _cdiv(B, block_b))
    if n_b == 1 and B >= 2 * _SUBLANE:
        # v7x has two TensorCores: a >=2-iteration "parallel" batch axis lets
        # both engage; per-step overhead (~0.35us) is negligible on v5e/v6e.
        n_b = 2
    tb = _round_up(_cdiv(B, n_b), _SUBLANE)
    n_b = _cdiv(B, tb)
    Bp = n_b * tb

    a = audio.astype(cdt)
    t = text.astype(cdt)
    if Bp != B:
        a = jnp.pad(a, ((0, Bp - B), (0, 0)))
        t = jnp.pad(t, ((0, Bp - B), (0, 0)))

    # --- gating-weight N tiling (keeps large Dout within v7x's 64 MiB VMEM) --
    if Dp <= block_n:
        tn = Dp
    else:
        tn = _LANE
        for cand in range((block_n // _LANE) * _LANE, _LANE - 1, -_LANE):
            if Dp % cand == 0:
                tn = cand
                break
    n_j = Dp // tn

    wa, wt, b_in, wc, bc = (params["wa"], params["wt"], params["b_in"],
                            params["wc"], params["bc"])

    isz = cdt.itemsize
    osz = jnp.dtype(out_dtype).itemsize

    # --- VMEM footprint -> explicit scoped limit ------------------------------
    vmem_bytes = (
        2 * 2 * tb * Din * isz                       # a, t (double-buffered)
        + 2 * Din * Dp * isz                         # wa, wt (single-buffered)
        + Dp * 4                                     # fused input bias
        + (1 if n_j == 1 else 2) * Dp * tn * isz     # wc tile(s)
        + (1 if n_j == 1 else 2) * tn * 4            # bc tile(s)
        + 2 * tb * tn * osz                          # output tile (double-buf)
        + tb * Dp * 4                                # y scratch
        + 3 * tb * max(Dp, tn) * 4                   # in-flight temporaries
    )
    vmem_limit = int(min(128 * 1024 * 1024,
                         max(32 * 1024 * 1024, vmem_bytes * 5 // 4)))

    cost = pl.CostEstimate(
        flops=4 * Bp * Din * Dp + 2 * Bp * Dp * Dp,
        transcendentals=Bp * Dp,                     # sigmoid
        bytes_accessed=(2 * Bp * Din * isz           # activations
                        + 2 * Din * Dp * isz         # input weights
                        + (n_b if n_j > 1 else 1) * Dp * Dp * isz   # gating w
                        + 2 * Dp * 4                 # biases
                        + Bp * Dp * osz),            # output
    )

    def _call(single_buffer_resident):
        res_kw = ({"pipeline_mode": pl.Buffered(1)}
                  if single_buffer_resident else {})
        # The gating weight/bias only stay on one block when n_j == 1.
        gate_kw = res_kw if n_j == 1 else {}
        return pl.pallas_call(
            functools.partial(_fgu_kernel, ep_dtype=epilogue_dtype),
            out_shape=jax.ShapeDtypeStruct((Bp, Dp), out_dtype),
            grid=(n_b, n_j),
            in_specs=[
                pl.BlockSpec((tb, Din), lambda i, j: (i, 0)),            # audio
                pl.BlockSpec((tb, Din), lambda i, j: (i, 0)),            # text
                pl.BlockSpec((Din, Dp), lambda i, j: (0, 0), **res_kw),  # Wa
                pl.BlockSpec((Din, Dp), lambda i, j: (0, 0), **res_kw),  # Wt
                pl.BlockSpec((1, Dp), lambda i, j: (0, 0), **res_kw),    # ba+bt
                pl.BlockSpec((Dp, tn), lambda i, j: (0, j), **gate_kw),  # Wc
                pl.BlockSpec((1, tn), lambda i, j: (0, j), **gate_kw),   # bc
            ],
            out_specs=pl.BlockSpec((tb, tn), lambda i, j: (i, j)),
            scratch_shapes=[pltpu.VMEM((tb, Dp), jnp.float32)],          # y
            compiler_params=pltpu.CompilerParams(
                dimension_semantics=("parallel", "arbitrary"),
                vmem_limit_bytes=vmem_limit),
            cost_estimate=cost,
        )(a, t, wa, wt, b_in, wc, bc)

    try:
        out = _call(True)
    except Exception:
        # Fallback for Pallas builds where single-buffering resident operands
        # via pl.Buffered(1) is not accepted; default double-buffering instead.
        out = _call(False)

    # TODO(synk): callers that tolerate a [Bp, Dp]-padded result can elide this
    # slice entirely (it is an extra HBM read+write of the whole output).
    if Bp == B and Dp == Dout:
        return out
    if Dp == Dout:
        return out[:B]
    return out[:B, :Dout]


# ----------------------------------------------------------------------------
# Reference + self-test
# ----------------------------------------------------------------------------
def _reference(audio, text, wa, ba, wt, bt, wc, bc):
    y = audio @ wa + ba + text @ wt + bt
    z = y @ wc + bc
    return y * jax.nn.sigmoid(z)


if __name__ == "__main__":
    key = jax.random.PRNGKey(0)

    # ---- test 1: small shapes matching the module, f32 exact + bf16 loose ----
    B, Din, Dout = 8, 32, 32
    ks = jax.random.split(key, 8)
    audio = jax.random.normal(ks[0], (B, Din), dtype=jnp.float32)
    text = jax.random.normal(ks[1], (B, Din), dtype=jnp.float32)
    wa = jax.random.normal(ks[2], (Din, Dout), dtype=jnp.float32) * 0.1
    ba = jax.random.normal(ks[3], (Dout,), dtype=jnp.float32) * 0.1
    wt = jax.random.normal(ks[4], (Din, Dout), dtype=jnp.float32) * 0.1
    bt = jax.random.normal(ks[5], (Dout,), dtype=jnp.float32) * 0.1
    wc = jax.random.normal(ks[6], (Dout, Dout), dtype=jnp.float32) * 0.1
    bc = jax.random.normal(ks[7], (Dout,), dtype=jnp.float32) * 0.1

    ref = _reference(audio, text, wa, ba, wt, bt, wc, bc)

    params_f32 = pack_fgu_params(wa, ba, wt, bt, wc, bc,
                                 compute_dtype=jnp.float32)
    out_f32 = jax.block_until_ready(fused_gated_unit(audio, text, params_f32))
    assert out_f32.shape == (B, Dout)
    assert jnp.allclose(out_f32, ref, atol=1e-5, rtol=1e-5)

    params_bf16 = pack_fgu_params(wa, ba, wt, bt, wc, bc,
                                  compute_dtype=jnp.bfloat16)
    out_bf16 = jax.block_until_ready(fused_gated_unit(audio, text, params_bf16))
    assert out_bf16.shape == (B, Dout)
    assert jnp.allclose(out_bf16, ref, atol=5e-2, rtol=5e-2)

    # ---- test 2: exercise batch padding, Dout padding, N-tiling, 2-D grid ----
    B2, Din2, Dout2 = 20, 48, 200
    ks2 = jax.random.split(jax.random.PRNGKey(1), 8)
    audio2 = jax.random.normal(ks2[0], (B2, Din2), dtype=jnp.float32)
    text2 = jax.random.normal(ks2[1], (B2, Din2), dtype=jnp.float32)
    wa2 = jax.random.normal(ks2[2], (Din2, Dout2), dtype=jnp.float32) * 0.1
    ba2 = jax.random.normal(ks2[3], (Dout2,), dtype=jnp.float32) * 0.1
    wt2 = jax.random.normal(ks2[4], (Din2, Dout2), dtype=jnp.float32) * 0.1
    bt2 = jax.random.normal(ks2[5], (Dout2,), dtype=jnp.float32) * 0.1
    wc2 = jax.random.normal(ks2[6], (Dout2, Dout2), dtype=jnp.float32) * 0.1
    bc2 = jax.random.normal(ks2[7], (Dout2,), dtype=jnp.float32) * 0.1

    ref2 = _reference(audio2, text2, wa2, ba2, wt2, bt2, wc2, bc2)
    params2 = pack_fgu_params(wa2, ba2, wt2, bt2, wc2, bc2,
                              compute_dtype=jnp.float32)
    out2 = jax.block_until_ready(
        fused_gated_unit(audio2, text2, params2, block_n=128))  # forces n_j = 2
    assert out2.shape == (B2, Dout2)
    assert jnp.allclose(out2, ref2, atol=1e-5, rtol=1e-5)

    print("KERNEL_OK")
</pallas_src>

<mosaic_0001>
module attributes {stable_mosaic.version = 11 : i64} {
  func.func @_fgu_kernel(%arg0: i32, %arg1: i32, %arg2: memref<8x32xf32, #tpu.memory_space<vmem>>, %arg3: memref<8x32xf32, #tpu.memory_space<vmem>>, %arg4: memref<32x128xf32, #tpu.memory_space<vmem>>, %arg5: memref<32x128xf32, #tpu.memory_space<vmem>>, %arg6: memref<1x128xf32, #tpu.memory_space<vmem>>, %arg7: memref<128x128xf32, #tpu.memory_space<vmem>>, %arg8: memref<1x128xf32, #tpu.memory_space<vmem>>, %arg9: memref<8x128xf32, #tpu.memory_space<vmem>>, %arg10: memref<8x128xf32, #tpu.memory_space<vmem>>) attributes {dimension_semantics = [#tpu.dimension_semantics<parallel>, #tpu.dimension_semantics<arbitrary>], iteration_bounds = array<i64: 1, 1>, scalar_prefetch = 0 : i64, scratch_operands = 1 : i64, tpu.core_type = #tpu.core_type<tc>, window_params = [{transform_indices = @transform_0, window_bounds = array<i64: 8, 32>}, {transform_indices = @transform_1, window_bounds = array<i64: 8, 32>}, {pipeline_mode = #tpu.pipeline_mode<synchronous>, transform_indices = @transform_2, window_bounds = array<i64: 32, 128>}, {pipeline_mode = #tpu.pipeline_mode<synchronous>, transform_indices = @transform_3, window_bounds = array<i64: 32, 128>}, {pipeline_mode = #tpu.pipeline_mode<synchronous>, transform_indices = @transform_4, window_bounds = array<i64: 1, 128>}, {pipeline_mode = #tpu.pipeline_mode<synchronous>, transform_indices = @transform_5, window_bounds = array<i64: 128, 128>}, {pipeline_mode = #tpu.pipeline_mode<synchronous>, transform_indices = @transform_6, window_bounds = array<i64: 1, 128>}, {transform_indices = @transform_7, window_bounds = array<i64: 8, 128>}]} {
    %c0_i32 = arith.constant 0 : i32
    %0 = arith.cmpi eq, %arg1, %c0_i32 : i32
    %1 = arith.extui %0 : i1 to i32
    %c0_i32_0 = arith.constant 0 : i32
    %2 = arith.cmpi ne, %1, %c0_i32_0 : i32
    scf.if %2 {
      %c0_10 = arith.constant 0 : index
      %c0_11 = arith.constant 0 : index
      %20 = vector.load %arg2[%c0_10, %c0_11] : memref<8x32xf32, #tpu.memory_space<vmem>>, vector<8x32xf32>
      %c0_12 = arith.constant 0 : index
      %c0_13 = arith.constant 0 : index
      %21 = vector.load %arg4[%c0_12, %c0_13] : memref<32x128xf32, #tpu.memory_space<vmem>>, vector<32x128xf32>
      %cst_14 = arith.constant dense<0.000000e+00> : vector<8x128xf32>
      %22 = tpu.matmul %20, %21, %cst_14 {dimension_numbers = #tpu.dot_dimension_numbers<[1], [0], [0], [1], [0, 0, 1, 1], [], []>} : vector<8x32xf32>, vector<32x128xf32>, vector<8x128xf32> -> vector<8x128xf32>
      %c0_15 = arith.constant 0 : index
      %c0_16 = arith.constant 0 : index
      %23 = vector.load %arg3[%c0_15, %c0_16] : memref<8x32xf32, #tpu.memory_space<vmem>>, vector<8x32xf32>
      %c0_17 = arith.constant 0 : index
      %c0_18 = arith.constant 0 : index
      %24 = vector.load %arg5[%c0_17, %c0_18] : memref<32x128xf32, #tpu.memory_space<vmem>>, vector<32x128xf32>
      %cst_19 = arith.constant dense<0.000000e+00> : vector<8x128xf32>
      %25 = tpu.matmul %23, %24, %cst_19 {dimension_numbers = #tpu.dot_dimension_numbers<[1], [0], [0], [1], [0, 0, 1, 1], [], []>} : vector<8x32xf32>, vector<32x128xf32>, vector<8x128xf32> -> vector<8x128xf32>
      %26 = arith.addf %22, %25 : vector<8x128xf32>
      %c0_20 = arith.constant 0 : index
      %c0_21 = arith.constant 0 : index
      %27 = vector.load %arg6[%c0_20, %c0_21] : memref<1x128xf32, #tpu.memory_space<vmem>>, vector<1x128xf32>
      %28 = vector.broadcast %27 : vector<1x128xf32> to vector<8x128xf32>
      %29 = arith.addf %26, %28 : vector<8x128xf32>
      %c0_22 = arith.constant 0 : index
      %c0_23 = arith.constant 0 : index
      %30 = vector.load %arg10[%c0_22, %c0_23] : memref<8x128xf32, #tpu.memory_space<vmem>>, vector<8x128xf32>
      tpu.vector_store %arg10[%c0_22, %c0_23], %29 {strides = array<i32>} : memref<8x128xf32, #tpu.memory_space<vmem>>, vector<8x128xf32>,
    } else {
    }
    %c0 = arith.constant 0 : index
    %c0_1 = arith.constant 0 : index
    %3 = vector.load %arg10[%c0, %c0_1] : memref<8x128xf32, #tpu.memory_space<vmem>>, vector<8x128xf32>
    %c0_2 = arith.constant 0 : index
    %c0_3 = arith.constant 0 : index
    %4 = vector.load %arg7[%c0_2, %c0_3] : memref<128x128xf32, #tpu.memory_space<vmem>>, vector<128x128xf32>
    %cst = arith.constant dense<0.000000e+00> : vector<8x128xf32>
    %5 = tpu.matmul %3, %4, %cst {dimension_numbers = #tpu.dot_dimension_numbers<[1], [0], [0], [1], [0, 0, 1, 1], [], []>} : vector<8x128xf32>, vector<128x128xf32>, vector<8x128xf32> -> vector<8x128xf32>
    %c0_4 = arith.constant 0 : index
    %c0_5 = arith.constant 0 : index
    %6 = vector.load %arg8[%c0_4, %c0_5] : memref<1x128xf32, #tpu.memory_space<vmem>>, vector<1x128xf32>
    %7 = vector.broadcast %6 : vector<1x128xf32> to vector<8x128xf32>
    %8 = arith.addf %5, %7 : vector<8x128xf32>
    %c128_i32 = arith.constant 128 : i32
    %9 = arith.muli %arg1, %c128_i32 : i32
    %10 = tpu.assume_multiple %9, 128 : i32
    %c0_6 = arith.constant 0 : index
    %11 = arith.index_cast %10 : i32 to index
    %12 = vector.load %arg10[%c0_6, %11] : memref<8x128xf32, #tpu.memory_space<vmem>>, vector<8x128xf32>
    %13 = arith.negf %8 : vector<8x128xf32>
    %14 = math.exp %13 : vector<8x128xf32>
    %cst_7 = arith.constant 1.000000e+00 : f32
    %15 = vector.broadcast %cst_7 : f32 to vector<8x128xf32>
    %16 = arith.addf %15, %14 : vector<8x128xf32>
    %17 = arith.divf %15, %16 : vector<8x128xf32>
    %18 = arith.mulf %12, %17 : vector<8x128xf32>
    %c0_8 = arith.constant 0 : index
    %c0_9 = arith.constant 0 : index
    %19 = vector.load %arg9[%c0_8, %c0_9] : memref<8x128xf32, #tpu.memory_space<vmem>>, vector<8x128xf32>
    tpu.vector_store %arg9[%c0_8, %c0_9], %18 {strides = array<i32>} : memref<8x128xf32, #tpu.memory_space<vmem>>, vector<8x128xf32>,
    return
  }
  func.func @transform_0(%arg0: i32, %arg1: i32) -> (i32, i32) {
    %c0_i32 = arith.constant 0 : i32
    %c0_i32_0 = arith.constant 0 : i32
    return %arg0, %c0_i32 : i32, i32
  }
  func.func @transform_1(%arg0: i32, %arg1: i32) -> (i32, i32) {
    %c0_i32 = arith.constant 0 : i32
    %c0_i32_0 = arith.constant 0 : i32
    return %arg0, %c0_i32 : i32, i32
  }
  func.func @transform_2(%arg0: i32, %arg1: i32) -> (i32, i32) {
    %c0_i32 = arith.constant 0 : i32
    %c0_i32_0 = arith.constant 0 : i32
    %c0_i32_1 = arith.constant 0 : i32
    return %c0_i32, %c0_i32_0 : i32, i32
  }
  func.func @transform_3(%arg0: i32, %arg1: i32) -> (i32, i32) {
    %c0_i32 = arith.constant 0 : i32
    %c0_i32_0 = arith.constant 0 : i32
    %c0_i32_1 = arith.constant 0 : i32
    return %c0_i32, %c0_i32_0 : i32, i32
  }
  func.func @transform_4(%arg0: i32, %arg1: i32) -> (i32, i32) {
    %c0_i32 = arith.constant 0 : i32
    %c0_i32_0 = arith.constant 0 : i32
    %c0_i32_1 = arith.constant 0 : i32
    return %c0_i32, %c0_i32_0 : i32, i32
  }
  func.func @transform_5(%arg0: i32, %arg1: i32) -> (i32, i32) {
    %c0_i32 = arith.constant 0 : i32
    %c0_i32_0 = arith.constant 0 : i32
    return %c0_i32, %arg1 : i32, i32
  }
  func.func @transform_6(%arg0: i32, %arg1: i32) -> (i32, i32) {
    %c0_i32 = arith.constant 0 : i32
    %c0_i32_0 = arith.constant 0 : i32
    return %c0_i32, %arg1 : i32, i32
  }
  func.func @transform_7(%arg0: i32, %arg1: i32) -> (i32, i32) {
    %c0_i32 = arith.constant 0 : i32
    return %arg0, %arg1 : i32, i32
  }
}

module attributes {stable_mosaic.version = 11 : i64} {
  func.func @_fgu_kernel(%arg0: i32, %arg1: i32, %arg2: memref<8x32xf32, #tpu.memory_space<vmem>>, %arg3: memref<8x32xf32, #tpu.memory_space<vmem>>, %arg4: memref<32x128xf32, #tpu.memory_space<vmem>>, %arg5: memref<32x128xf32, #tpu.memory_space<vmem>>, %arg6: memref<1x128xf32, #tpu.memory_space<vmem>>, %arg7: memref<128x128xf32, #tpu.memory_space<vmem>>, %arg8: memref<1x128xf32, #tpu.memory_space<vmem>>, %arg9: memref<8x128xf32, #tpu.memory_space<vmem>>, %arg10: memref<8x128xf32, #tpu.memory_space<vmem>>) attributes {dimension_semantics = [#tpu.dimension_semantics<parallel>, #tpu.dimension_semantics<arbitrary>], iteration_bounds = array<i64: 1, 1>, scalar_prefetch = 0 : i64, scratch_operands = 1 : i64, tpu.core_type = #tpu.core_type<tc>, window_params = [{transform_indices = @transform_0, window_bounds = array<i64: 8, 32>}, {transform_indices = @transform_1, window_bounds = array<i64: 8, 32>}, {pipeline_mode = #tpu.pipeline_mode<synchronous>, transform_indices = @transform_2, window_bounds = array<i64: 32, 128>}, {pipeline_mode = #tpu.pipeline_mode<synchronous>, transform_indices = @transform_3, window_bounds = array<i64: 32, 128>}, {pipeline_mode = #tpu.pipeline_mode<synchronous>, transform_indices = @transform_4, window_bounds = array<i64: 1, 128>}, {transform_indices = @transform_5, window_bounds = array<i64: 128, 128>}, {transform_indices = @transform_6, window_bounds = array<i64: 1, 128>}, {transform_indices = @transform_7, window_bounds = array<i64: 8, 128>}]} {
    %c0_i32 = arith.constant 0 : i32
    %0 = arith.cmpi eq, %arg1, %c0_i32 : i32
    %1 = arith.extui %0 : i1 to i32
    %c0_i32_0 = arith.constant 0 : i32
    %2 = arith.cmpi ne, %1, %c0_i32_0 : i32
    scf.if %2 {
      %c0_10 = arith.constant 0 : index
      %c0_11 = arith.constant 0 : index
      %20 = vector.load %arg2[%c0_10, %c0_11] : memref<8x32xf32, #tpu.memory_space<vmem>>, vector<8x32xf32>
      %c0_12 = arith.constant 0 : index
      %c0_13 = arith.constant 0 : index
      %21 = vector.load %arg4[%c0_12, %c0_13] : memref<32x128xf32, #tpu.memory_space<vmem>>, vector<32x128xf32>
      %cst_14 = arith.constant dense<0.000000e+00> : vector<8x128xf32>
      %22 = tpu.matmul %20, %21, %cst_14 {dimension_numbers = #tpu.dot_dimension_numbers<[1], [0], [0], [1], [0, 0, 1, 1], [], []>} : vector<8x32xf32>, vector<32x128xf32>, vector<8x128xf32> -> vector<8x128xf32>
      %c0_15 = arith.constant 0 : index
      %c0_16 = arith.constant 0 : index
      %23 = vector.load %arg3[%c0_15, %c0_16] : memref<8x32xf32, #tpu.memory_space<vmem>>, vector<8x32xf32>
      %c0_17 = arith.constant 0 : index
      %c0_18 = arith.constant 0 : index
      %24 = vector.load %arg5[%c0_17, %c0_18] : memref<32x128xf32, #tpu.memory_space<vmem>>, vector<32x128xf32>
      %cst_19 = arith.constant dense<0.000000e+00> : vector<8x128xf32>
      %25 = tpu.matmul %23, %24, %cst_19 {dimension_numbers = #tpu.dot_dimension_numbers<[1], [0], [0], [1], [0, 0, 1, 1], [], []>} : vector<8x32xf32>, vector<32x128xf32>, vector<8x128xf32> -> vector<8x128xf32>
      %26 = arith.addf %22, %25 : vector<8x128xf32>
      %c0_20 = arith.constant 0 : index
      %c0_21 = arith.constant 0 : index
      %27 = vector.load %arg6[%c0_20, %c0_21] : memref<1x128xf32, #tpu.memory_space<vmem>>, vector<1x128xf32>
      %28 = vector.broadcast %27 : vector<1x128xf32> to vector<8x128xf32>
      %29 = arith.addf %26, %28 : vector<8x128xf32>
      %c0_22 = arith.constant 0 : index
      %c0_23 = arith.constant 0 : index
      %30 = vector.load %arg10[%c0_22, %c0_23] : memref<8x128xf32, #tpu.memory_space<vmem>>, vector<8x128xf32>
      tpu.vector_store %arg10[%c0_22, %c0_23], %29 {strides = array<i32>} : memref<8x128xf32, #tpu.memory_space<vmem>>, vector<8x128xf32>,
    } else {
    }
    %c0 = arith.constant 0 : index
    %c0_1 = arith.constant 0 : index
    %3 = vector.load %arg10[%c0, %c0_1] : memref<8x128xf32, #tpu.memory_space<vmem>>, vector<8x128xf32>
    %c0_2 = arith.constant 0 : index
    %c0_3 = arith.constant 0 : index
    %4 = vector.load %arg7[%c0_2, %c0_3] : memref<128x128xf32, #tpu.memory_space<vmem>>, vector<128x128xf32>
    %cst = arith.constant dense<0.000000e+00> : vector<8x128xf32>
    %5 = tpu.matmul %3, %4, %cst {dimension_numbers = #tpu.dot_dimension_numbers<[1], [0], [0], [1], [0, 0, 1, 1], [], []>} : vector<8x128xf32>, vector<128x128xf32>, vector<8x128xf32> -> vector<8x128xf32>
    %c0_4 = arith.constant 0 : index
    %c0_5 = arith.constant 0 : index
    %6 = vector.load %arg8[%c0_4, %c0_5] : memref<1x128xf32, #tpu.memory_space<vmem>>, vector<1x128xf32>
    %7 = vector.broadcast %6 : vector<1x128xf32> to vector<8x128xf32>
    %8 = arith.addf %5, %7 : vector<8x128xf32>
    %c128_i32 = arith.constant 128 : i32
    %9 = arith.muli %arg1, %c128_i32 : i32
    %10 = tpu.assume_multiple %9, 128 : i32
    %c0_6 = arith.constant 0 : index
    %11 = arith.index_cast %10 : i32 to index
    %12 = vector.load %arg10[%c0_6, %11] : memref<8x128xf32, #tpu.memory_space<vmem>>, vector<8x128xf32>
    %13 = arith.negf %8 : vector<8x128xf32>
    %14 = math.exp %13 : vector<8x128xf32>
    %cst_7 = arith.constant 1.000000e+00 : f32
    %15 = vector.broadcast %cst_7 : f32 to vector<8x128xf32>
    %16 = arith.addf %15, %14 : vector<8x128xf32>
    %17 = arith.divf %15, %16 : vector<8x128xf32>
    %18 = arith.mulf %12, %17 : vector<8x128xf32>
    %c0_8 = arith.constant 0 : index
    %c0_9 = arith.constant 0 : index
    %19 = vector.load %arg9[%c0_8, %c0_9] : memref<8x128xf32, #tpu.memory_space<vmem>>, vector<8x128xf32>
    tpu.vector_store %arg9[%c0_8, %c0_9], %18 {strides = array<i32>} : memref<8x128xf32, #tpu.memory_space<vmem>>, vector<8x128xf32>,
    return
  }
  func.func @transform_0(%arg0: i32, %arg1: i32) -> (i32, i32) {
    %c0_i32 = arith.constant 0 : i32
    %c0_i32_0 = arith.constant 0 : i32
    return %arg0, %c0_i32 : i32, i32
  }
  func.func @transform_1(%arg0: i32, %arg1: i32) -> (i32, i32) {
    %c0_i32 = arith.constant 0 : i32
    %c0_i32_0 = arith.constant 0 : i32
    return %arg0, %c0_i32 : i32, i32
  }
  func.func @transform_2(%arg0: i32, %arg1: i32) -> (i32, i32) {
    %c0_i32 = arith.constant 0 : i32
    %c0_i32_0 = arith.constant 0 : i32
    %c0_i32_1 = arith.constant 0 : i32
    return %c0_i32, %c0_i32_0 : i32, i32
  }
  func.func @transform_3(%arg0: i32, %arg1: i32) -> (i32, i32) {
    %c0_i32 = arith.constant 0 : i32
    %c0_i32_0 = arith.constant 0 : i32
    %c0_i32_1 = arith.constant 0 : i32
    return %c0_i32, %c0_i32_0 : i32, i32
  }
  func.func @transform_4(%arg0: i32, %arg1: i32) -> (i32, i32) {
    %c0_i32 = arith.constant 0 : i32
    %c0_i32_0 = arith.constant 0 : i32
    %c0_i32_1 = arith.constant 0 : i32
    return %c0_i32, %c0_i32_0 : i32, i32
  }
  func.func @transform_5(%arg0: i32, %arg1: i32) -> (i32, i32) {
    %c0_i32 = arith.constant 0 : i32
    %c0_i32_0 = arith.constant 0 : i32
    return %c0_i32, %arg1 : i32, i32
  }
  func.func @transform_6(%arg0: i32, %arg1: i32) -> (i32, i32) {
    %c0_i32 = arith.constant 0 : i32
    %c0_i32_0 = arith.constant 0 : i32
    return %c0_i32, %arg1 : i32, i32
  }
  func.func @transform_7(%arg0: i32, %arg1: i32) -> (i32, i32) {
    %c0_i32 = arith.constant 0 : i32
    return %arg0, %arg1 : i32, i32
  }
}

</mosaic_0001>

<llo_original>
// kernel: tpu_custom_call.1
$region0: #{tpu_custom_call.1}
  #allocation0 [shape = 'u32[]', space=smem, size = 0x4, offset = 0x4, fixed_abs, tag = 'smem constant byte address 0x4 - core index']
  #allocation1 [shape = 'u32[144,128]{1,0:T(1,128)}', space=vmem, size = 0x12000, scoped, tag = 'internal scratch']
  #allocation2 [shape = 'f32[8,128]{1,0:T(8,128)}', space=vmem, size = 0x1000, scoped, tag = 'scratch operand']
  %s0 = inlined_call_operand.hbm [shape: f32[8,32], index: 0, kind: input, shape index: {}]
  %s1 = inlined_call_operand.hbm [shape: f32[8,32], index: 1, kind: input, shape index: {}]
  %s2 = inlined_call_operand.hbm [shape: f32[32,128], index: 2, kind: input, shape index: {}]
  %s3 = inlined_call_operand.hbm [shape: f32[32,128], index: 3, kind: input, shape index: {}]
  %s4 = inlined_call_operand.vmem [shape: f32[1,128], index: 4, kind: input, shape index: {}]
  %s5 = inlined_call_operand.hbm [shape: f32[128,128], index: 5, kind: input, shape index: {}]
  %s6 = inlined_call_operand.vmem [shape: f32[1,128], index: 6, kind: input, shape index: {}]
  %s7 = inlined_call_operand.hbm [shape: f32[8,128], index: 7, kind: output, shape index: {}]
  %s8 = sld [smem:[#allocation0]]
  $region62: #{tpu_custom_call.1} parent=0
    _
  %s10 = ssub.s32 1, %s8
  %s11 = scalar_select 0, %s10, %s8
  $region1: #{tpu_custom_call.1} parent=0
    #allocation3 [shape = 'u8[4096]{0}', space=vmem, size = 0x1000, scoped, tag = 'input window, operand 0, single buffered']
    #allocation4 [shape = 's32[1]{0}', space=sflag, size = 0x4, scoped, tag = 'scoped memory for tpu_custom_call.1']
    #allocation5 [shape = 's32[1]{0}', space=sflag, size = 0x4, scoped, tag = 'scoped memory for tpu_custom_call.1']
    #allocation6 [shape = 'u8[4096]{0}', space=vmem, size = 0x1000, scoped, tag = 'input window, operand 1, single buffered']
    #allocation7 [shape = 's32[1]{0}', space=sflag, size = 0x4, scoped, tag = 'scoped memory for tpu_custom_call.1']
    #allocation8 [shape = 'u8[16384]{0}', space=vmem, size = 0x4000, scoped, tag = 'input window, operand 2, single buffered']
    #allocation9 [shape = 'u8[16384]{0}', space=vmem, size = 0x4000, scoped, tag = 'input window, operand 3, single buffered']
    #allocation10 [shape = 's32[1]{0}', space=sflag, size = 0x4, scoped, tag = 'scoped memory for tpu_custom_call.1']
    #allocation11 [shape = 'u8[65536]{0}', space=vmem, size = 0x10000, scoped, tag = 'input window, operand 5, single buffered']
    #allocation12 [shape = 'u8[4096]{0}', space=vmem, size = 0x1000, scoped, tag = 'output window, operand 0, single buffered']
    %12 = vsyncpa [#allocation4], 0
    %13 = vsyncpa [#allocation7], 0
    %14 = vsyncpa [#allocation10], 0
    %15 = vsyncpa [#allocation5], 0
    // Predicated region
    $region2: #{tpu_custom_call.1} parent=1 // pred_check
      _
    $region3: #{tpu_custom_call.1} parent=1 // pred_check_branch
      %17 = sbr.rel (0) target = $region5
    $region4: #{tpu_custom_call.1} parent=1 // pred_region
      %s19 = ssub.s32 128, 128
      %20 = vsyncadd [#allocation4], %s19
      %s22 = sshll.u32 [#allocation3], 4
      %s23 = int_to_ptr.vmem [resolvable:$true] %s22
      %25 = dma.hbm_to_vmem [thread:$0]  %s0, 128, %s23, [#allocation4]
    $region5: #{tpu_custom_call.1} parent=1 // pred_fallthru
      _
    // Predicated region
    $region6: #{tpu_custom_call.1} parent=1 // pred_check
      _
    $region7: #{tpu_custom_call.1} parent=1 // pred_check_branch
      %27 = sbr.rel (0) target = $region9
    $region8: #{tpu_custom_call.1} parent=1 // pred_region
      %s29 = ssub.s32 128, 128
      %30 = vsyncadd [#allocation7], %s29
      %s32 = sshll.u32 [#allocation6], 4
      %s33 = int_to_ptr.vmem [resolvable:$true] %s32
      %35 = dma.hbm_to_vmem [thread:$0]  %s1, 128, %s33, [#allocation7]
    $region9: #{tpu_custom_call.1} parent=1 // pred_fallthru
      _
    // Predicated region
    $region10: #{tpu_custom_call.1} parent=1 // pred_check
      _
    $region11: #{tpu_custom_call.1} parent=1 // pred_check_branch
      %37 = sbr.rel (0) target = $region13
    $region12: #{tpu_custom_call.1} parent=1 // pred_region
      %s39 = ssub.s32 512, 512
      %40 = vsyncadd [#allocation7], %s39
      %s41 = sshll.u32 [#allocation8], 4
      %s42 = int_to_ptr.vmem [resolvable:$true] %s41
      %47 = dma.hbm_to_vmem [thread:$0]  %s2, 512, %s42, [#allocation7], 128, 128, 8
    $region13: #{tpu_custom_call.1} parent=1 // pred_fallthru
      _
    // Predicated region
    $region14: #{tpu_custom_call.1} parent=1 // pred_check
      _
    $region15: #{tpu_custom_call.1} parent=1 // pred_check_branch
      %49 = sbr.rel (0) target = $region17
    $region16: #{tpu_custom_call.1} parent=1 // pred_region
      %s51 = ssub.s32 512, 512
      %52 = vsyncadd [#allocation10], %s51
      %s53 = sshll.u32 [#allocation9], 4
      %s54 = int_to_ptr.vmem [resolvable:$true] %s53
      %59 = dma.hbm_to_vmem [thread:$0]  %s3, 512, %s54, [#allocation10], 128, 128, 8
    $region17: #{tpu_custom_call.1} parent=1 // pred_fallthru
      _
    // Predicated region
    $region18: #{tpu_custom_call.1} parent=1 // pred_check
      _
    $region19: #{tpu_custom_call.1} parent=1 // pred_check_branch
      %61 = sbr.rel (0) target = $region21
    $region20: #{tpu_custom_call.1} parent=1 // pred_region
      _
    $region21: #{tpu_custom_call.1} parent=1 // pred_fallthru
      _
    // Predicated region
    $region22: #{tpu_custom_call.1} parent=1 // pred_check
      _
    $region23: #{tpu_custom_call.1} parent=1 // pred_check_branch
      %63 = sbr.rel (0) target = $region25
    $region24: #{tpu_custom_call.1} parent=1 // pred_region
      %s65 = ssub.s32 2048, 2048
      %66 = vsyncadd [#allocation10], %s65
      %s67 = sshll.u32 [#allocation11], 4
      %s68 = int_to_ptr.vmem [resolvable:$true] %s67
      %73 = dma.hbm_to_vmem [thread:$0]  %s5, 2048, %s68, [#allocation10], 128, 128, 8
    $region25: #{tpu_custom_call.1} parent=1 // pred_fallthru
      _
    // Predicated region
    $region26: #{tpu_custom_call.1} parent=1 // pred_check
      _
    $region27: #{tpu_custom_call.1} parent=1 // pred_check_branch
      %75 = sbr.rel (0) target = $region29
    $region28: #{tpu_custom_call.1} parent=1 // pred_region
      _
    $region29: #{tpu_custom_call.1} parent=1 // pred_fallthru
      _
    // Predicated region
    $region30: #{tpu_custom_call.1} parent=1 // pred_check
      _
    $region31: #{tpu_custom_call.1} parent=1 // pred_check_branch
      %77 = sbr.rel (0) target = $region33
    $region32: #{tpu_custom_call.1} parent=1 // pred_region
      %78 = dma.done [#allocation4], 128
    $region33: #{tpu_custom_call.1} parent=1 // pred_fallthru
      _
    // Predicated region
    $region34: #{tpu_custom_call.1} parent=1 // pred_check
      _
    $region35: #{tpu_custom_call.1} parent=1 // pred_check_branch
      %80 = sbr.rel (0) target = $region37
    $region36: #{tpu_custom_call.1} parent=1 // pred_region
      %81 = dma.done [#allocation7], 128
    $region37: #{tpu_custom_call.1} parent=1 // pred_fallthru
      _
    // Predicated region
    $region38: #{tpu_custom_call.1} parent=1 // pred_check
      _
    $region39: #{tpu_custom_call.1} parent=1 // pred_check_branch
      %83 = sbr.rel (0) target = $region41
    $region40: #{tpu_custom_call.1} parent=1 // pred_region
      %84 = dma.done [#allocation7], 512
    $region41: #{tpu_custom_call.1} parent=1 // pred_fallthru
      _
    // Predicated region
    $region42: #{tpu_custom_call.1} parent=1 // pred_check
      _
    $region43: #{tpu_custom_call.1} parent=1 // pred_check_branch
      %86 = sbr.rel (0) target = $region45
    $region44: #{tpu_custom_call.1} parent=1 // pred_region
      %87 = dma.done [#allocation10], 512
    $region45: #{tpu_custom_call.1} parent=1 // pred_fallthru
      _
    // Predicated region
    $region46: #{tpu_custom_call.1} parent=1 // pred_check
      _
    $region47: #{tpu_custom_call.1} parent=1 // pred_check_branch
      %89 = sbr.rel (0) target = $region49
    $region48: #{tpu_custom_call.1} parent=1 // pred_region
      %90 = dma.done [#allocation10], 2048
    $region49: #{tpu_custom_call.1} parent=1 // pred_fallthru
      _
    %p91 = scmp.eq.s32.totalorder 0, 0
    // Predicated region
    $region50: #{tpu_custom_call.1} parent=1 // pred_check
      %p92 = pneg %p91
    $region51: #{tpu_custom_call.1} parent=1 // pred_check_branch
      %94 = sbr.rel (%p92) target = $region53
    $region52: #{tpu_custom_call.1} parent=1 // pred_region
      %v95 = vld [vmem:[#allocation3] sm:$0xff]
      %v96 = vld [vmem:[#allocation8] sm:$0xff]
      %v97 = vld [vmem:[#allocation8 + $0x8] sm:$0xff]
      %v98 = vld [vmem:[#allocation8 + $0x10] sm:$0xff]
      %v99 = vld [vmem:[#allocation8 + $0x18] sm:$0xff]
      %v100 = vld [vmem:[#allocation6] sm:$0xff]
      %v101 = vld [vmem:[#allocation9] sm:$0xff]
      %v102 = vld [vmem:[#allocation9 + $0x8] sm:$0xff]
      %v103 = vld [vmem:[#allocation9 + $0x10] sm:$0xff]
      %v104 = vld [vmem:[#allocation9 + $0x18] sm:$0xff]
      %vm105 = vcmask 261120
      %v107 = vsel %vm105, %v100, 0
      %109 = vmatprep.subr.mxu0 0.0
      %110 = vmatpush1.msra.mxu0 0.0
      %111 = vmatprep.subr.mxu0 0.0
      %112 = vmatpush1.msra.mxu0 0.0
      %113 = vmatprep.subr.mxu0 0.0
      %114 = vmatpush1.msra.mxu0 0.0
      %115 = vmatprep.subr.mxu0 0.0
      %116 = vmatpush1.msra.mxu0 0.0
      %117 = vmatprep.subr.mxu0 0.0
      %118 = vmatpush1.msra.mxu0 0.0
      %119 = vmatprep.subr.mxu0 0.0
      %120 = vmatpush1.msra.mxu0 0.0
      %121 = vmatprep.subr.mxu0 0.0
      %122 = vmatpush1.msra.mxu0 0.0
      %123 = vmatprep.subr.mxu0 0.0
      %124 = vmatpush1.msra.mxu0 0.0
      %125 = vmatprep.subr.mxu0 0.0
      %126 = vmatpush1.msra.mxu0 0.0
      %127 = vmatprep.subr.mxu0 0.0
      %128 = vmatpush1.msra.mxu0 0.0
      %129 = vmatprep.subr.mxu0 0.0
      %130 = vmatpush1.msra.mxu0 0.0
      %131 = vmatprep.subr.mxu0 0.0
      %132 = vmatpush1.msra.mxu0 0.0
      %133 = vmatprep.subr.mxu0 0.0
      %134 = vmatpush1.msra.mxu0 %v104
      %135 = vmatprep.subr.mxu0 0.0
      %136 = vmatpush1.msra.mxu0 %v103
      %137 = vmatprep.subr.mxu0 0.0
      %138 = vmatpush1.msra.mxu0 %v102
      %139 = vmatprep.subr.mxu0 0.0
      %140 = vmatpush1.msra.mxu0 %v101
      %141 = vmatprep.subr.mxu0 0.0
      %142 = vmatpush2.msra.mxu0 0.0
      %143 = vmatprep.subr.mxu0 0.0
      %144 = vmatpush2.msra.mxu0 0.0
      %145 = vmatprep.subr.mxu0 0.0
      %146 = vmatpush2.msra.mxu0 0.0
      %147 = vmatprep.subr.mxu0 0.0
      %148 = vmatpush2.msra.mxu0 0.0
      %149 = vmatprep.subr.mxu0 0.0
      %150 = vmatpush2.msra.mxu0 0.0
      %151 = vmatprep.subr.mxu0 0.0
      %152 = vmatpush2.msra.mxu0 0.0
      %153 = vmatprep.subr.mxu0 0.0
      %154 = vmatpush2.msra.mxu0 0.0
      %155 = vmatprep.subr.mxu0 0.0
      %156 = vmatpush2.msra.mxu0 0.0
      %157 = vmatprep.subr.mxu0 0.0
      %158 = vmatpush2.msra.mxu0 0.0
      %159 = vmatprep.subr.mxu0 0.0
      %160 = vmatpush2.msra.mxu0 0.0
      %161 = vmatprep.subr.mxu0 0.0
      %162 = vmatpush2.msra.mxu0 0.0
      %163 = vmatprep.subr.mxu0 0.0
      %164 = vmatpush2.msra.mxu0 0.0
      %165 = vmatprep.subr.mxu0 0.0
      %166 = vmatpush2.msra.mxu0 0.0
      %167 = vmatprep.subr.mxu0 0.0
      %168 = vmatpush2.msra.mxu0 0.0
      %169 = vmatprep.subr.mxu0 0.0
      %170 = vmatpush2.msra.mxu0 0.0
      %171 = vmatprep.subr.mxu0 0.0
      %172 = vmatpush2.msra.mxu0 0.0
      %173 = vmatprep.mubr.f32.mxu0 0.0
      %174 = vmatmul.mubr.f32.gmra.mxu0 %v107
      %v175 = vpop.f32.mrf.mxu0
      %v176 = vadd.f32 0.0, %v175
      %v177 = vpop.f32.mrf.mxu0
      %178 = vdwg.mxu0
      %v180 = vsel %vm105, %v95, 0
      %182 = vmatprep.subr.mxu0 0.0
      %183 = vmatpush1.msra.mxu0 0.0
      %184 = vmatprep.subr.mxu0 0.0
      %185 = vmatpush1.msra.mxu0 0.0
      %186 = vmatprep.subr.mxu0 0.0
      %187 = vmatpush1.msra.mxu0 0.0
      %188 = vmatprep.subr.mxu0 0.0
      %189 = vmatpush1.msra.mxu0 0.0
      %190 = vmatprep.subr.mxu0 0.0
      %191 = vmatpush1.msra.mxu0 0.0
      %192 = vmatprep.subr.mxu0 0.0
      %193 = vmatpush1.msra.mxu0 0.0
      %194 = vmatprep.subr.mxu0 0.0
      %195 = vmatpush1.msra.mxu0 0.0
      %196 = vmatprep.subr.mxu0 0.0
      %197 = vmatpush1.msra.mxu0 0.0
      %198 = vmatprep.subr.mxu0 0.0
      %199 = vmatpush1.msra.mxu0 0.0
      %200 = vmatprep.subr.mxu0 0.0
      %201 = vmatpush1.msra.mxu0 0.0
      %202 = vmatprep.subr.mxu0 0.0
      %203 = vmatpush1.msra.mxu0 0.0
      %204 = vmatprep.subr.mxu0 0.0
      %205 = vmatpush1.msra.mxu0 0.0
      %206 = vmatprep.subr.mxu0 0.0
      %207 = vmatpush1.msra.mxu0 %v99
      %208 = vmatprep.subr.mxu0 0.0
      %209 = vmatpush1.msra.mxu0 %v98
      %210 = vmatprep.subr.mxu0 0.0
      %211 = vmatpush1.msra.mxu0 %v97
      %212 = vmatprep.subr.mxu0 0.0
      %213 = vmatpush1.msra.mxu0 %v96
      %214 = vmatprep.subr.mxu0 0.0
      %215 = vmatpush2.msra.mxu0 0.0
      %216 = vmatprep.subr.mxu0 0.0
      %217 = vmatpush2.msra.mxu0 0.0
      %218 = vmatprep.subr.mxu0 0.0
      %219 = vmatpush2.msra.mxu0 0.0
      %220 = vmatprep.subr.mxu0 0.0
      %221 = vmatpush2.msra.mxu0 0.0
      %222 = vmatprep.subr.mxu0 0.0
      %223 = vmatpush2.msra.mxu0 0.0
      %224 = vmatprep.subr.mxu0 0.0
      %225 = vmatpush2.msra.mxu0 0.0
      %226 = vmatprep.subr.mxu0 0.0
      %227 = vmatpush2.msra.mxu0 0.0
      %228 = vmatprep.subr.mxu0 0.0
      %229 = vmatpush2.msra.mxu0 0.0
      %230 = vmatprep.subr.mxu0 0.0
      %231 = vmatpush2.msra.mxu0 0.0
      %232 = vmatprep.subr.mxu0 0.0
      %233 = vmatpush2.msra.mxu0 0.0
      %234 = vmatprep.subr.mxu0 0.0
      %235 = vmatpush2.msra.mxu0 0.0
      %236 = vmatprep.subr.mxu0 0.0
      %237 = vmatpush2.msra.mxu0 0.0
      %238 = vmatprep.subr.mxu0 0.0
      %239 = vmatpush2.msra.mxu0 0.0
      %240 = vmatprep.subr.mxu0 0.0
      %241 = vmatpush2.msra.mxu0 0.0
      %242 = vmatprep.subr.mxu0 0.0
      %243 = vmatpush2.msra.mxu0 0.0
      %244 = vmatprep.subr.mxu0 0.0
      %245 = vmatpush2.msra.mxu0 0.0
      %246 = vmatprep.mubr.f32.mxu0 0.0
      %247 = vmatmul.mubr.f32.gmra.mxu0 %v180
      %v248 = vpop.f32.mrf.mxu0
      %v249 = vadd.f32 %v176, %v248
      %v250 = vpop.f32.mrf.mxu0
      %251 = vdwg.mxu0
      %v252 = vld [vmem:[%s4] sm:$0x1]
      %v254 = vlaneseq
      %v255 = vshrl.u32 %v254, 7
      %v256 = vsub.s32 0, %v255
      %v257 = vrot.slane %v252, %v256
      %v259 = vadd.f32 %v249, %v257
      %260 = vst [vmem:[#allocation2] sm:$0xff] %v259
    $region53: #{tpu_custom_call.1} parent=1 // pred_fallthru
      _
    %v261 = vld [vmem:[#allocation2] sm:$0xff]
    %v262 = vld [vmem:[#allocation11] sm:$0xff]
    %v263 = vld [vmem:[#allocation11 + $0x8] sm:$0xff]
    %v264 = vld [vmem:[#allocation11 + $0x10] sm:$0xff]
    %v265 = vld [vmem:[#allocation11 + $0x18] sm:$0xff]
    %v266 = vld [vmem:[#allocation11 + $0x20] sm:$0xff]
    %v267 = vld [vmem:[#allocation11 + $0x28] sm:$0xff]
    %v268 = vld [vmem:[#allocation11 + $0x30] sm:$0xff]
    %v269 = vld [vmem:[#allocation11 + $0x38] sm:$0xff]
    %v270 = vld [vmem:[#allocation11 + $0x40] sm:$0xff]
    %v271 = vld [vmem:[#allocation11 + $0x48] sm:$0xff]
    %v272 = vld [vmem:[#allocation11 + $0x50] sm:$0xff]
    %v273 = vld [vmem:[#allocation11 + $0x58] sm:$0xff]
    %v274 = vld [vmem:[#allocation11 + $0x60] sm:$0xff]
    %v275 = vld [vmem:[#allocation11 + $0x68] sm:$0xff]
    %v276 = vld [vmem:[#allocation11 + $0x70] sm:$0xff]
    %v277 = vld [vmem:[#allocation11 + $0x78] sm:$0xff]
    %v278 = vld [vmem:[%s6] sm:$0x1]
    %v280 = vlaneseq
    %v281 = vshrl.u32 %v280, 7
    %v282 = vsub.s32 0, %v281
    %v283 = vrot.slane %v278, %v282
    %285 = vmatprep.subr.mxu0 0.0
    %286 = vmatpush1.msra.mxu0 %v277
    %287 = vmatprep.subr.mxu0 0.0
    %288 = vmatpush1.msra.mxu0 %v276
    %289 = vmatprep.subr.mxu0 0.0
    %290 = vmatpush1.msra.mxu0 %v275
    %291 = vmatprep.subr.mxu0 0.0
    %292 = vmatpush1.msra.mxu0 %v274
    %293 = vmatprep.subr.mxu0 0.0
    %294 = vmatpush1.msra.mxu0 %v273
    %295 = vmatprep.subr.mxu0 0.0
    %296 = vmatpush1.msra.mxu0 %v272
    %297 = vmatprep.subr.mxu0 0.0
    %298 = vmatpush1.msra.mxu0 %v271
    %299 = vmatprep.subr.mxu0 0.0
    %300 = vmatpush1.msra.mxu0 %v270
    %301 = vmatprep.subr.mxu0 0.0
    %302 = vmatpush1.msra.mxu0 %v269
    %303 = vmatprep.subr.mxu0 0.0
    %304 = vmatpush1.msra.mxu0 %v268
    %305 = vmatprep.subr.mxu0 0.0
    %306 = vmatpush1.msra.mxu0 %v267
    %307 = vmatprep.subr.mxu0 0.0
    %308 = vmatpush1.msra.mxu0 %v266
    %309 = vmatprep.subr.mxu0 0.0
    %310 = vmatpush1.msra.mxu0 %v265
    %311 = vmatprep.subr.mxu0 0.0
    %312 = vmatpush1.msra.mxu0 %v264
    %313 = vmatprep.subr.mxu0 0.0
    %314 = vmatpush1.msra.mxu0 %v263
    %315 = vmatprep.subr.mxu0 0.0
    %316 = vmatpush1.msra.mxu0 %v262
    %317 = vmatprep.subr.mxu0 0.0
    %318 = vmatpush2.msra.mxu0 0.0
    %319 = vmatprep.subr.mxu0 0.0
    %320 = vmatpush2.msra.mxu0 0.0
    %321 = vmatprep.subr.mxu0 0.0
    %322 = vmatpush2.msra.mxu0 0.0
    %323 = vmatprep.subr.mxu0 0.0
    %324 = vmatpush2.msra.mxu0 0.0
    %325 = vmatprep.subr.mxu0 0.0
    %326 = vmatpush2.msra.mxu0 0.0
    %327 = vmatprep.subr.mxu0 0.0
    %328 = vmatpush2.msra.mxu0 0.0
    %329 = vmatprep.subr.mxu0 0.0
    %330 = vmatpush2.msra.mxu0 0.0
    %331 = vmatprep.subr.mxu0 0.0
    %332 = vmatpush2.msra.mxu0 0.0
    %333 = vmatprep.subr.mxu0 0.0
    %334 = vmatpush2.msra.mxu0 0.0
    %335 = vmatprep.subr.mxu0 0.0
    %336 = vmatpush2.msra.mxu0 0.0
    %337 = vmatprep.subr.mxu0 0.0
    %338 = vmatpush2.msra.mxu0 0.0
    %339 = vmatprep.subr.mxu0 0.0
    %340 = vmatpush2.msra.mxu0 0.0
    %341 = vmatprep.subr.mxu0 0.0
    %342 = vmatpush2.msra.mxu0 0.0
    %343 = vmatprep.subr.mxu0 0.0
    %344 = vmatpush2.msra.mxu0 0.0
    %345 = vmatprep.subr.mxu0 0.0
    %346 = vmatpush2.msra.mxu0 0.0
    %347 = vmatprep.subr.mxu0 0.0
    %348 = vmatpush2.msra.mxu0 0.0
    %349 = vmatprep.mubr.f32.mxu0 0.0
    %350 = vmatmul.mubr.f32.gmra.mxu0 %v261
    %v351 = vpop.f32.mrf.mxu0
    %v352 = vadd.f32 %v283, %v351
    %v353 = vpop.f32.mrf.mxu0
    %354 = vdwg.mxu0
    %s355 = smul.u32 0, 128
    %s356 = sshra.s32 %s355, 7
    %s357 = sand.u32 %s355, 127
    %s358 = scalar_lea.vmem [#allocation2], %s356
    %v359 = vld [vmem:[%s358] sm:$0xff]
    %v360 = vxor.u32 %v352, 2147483648
    %v361 = vmul.f32 %v360, 1.442695
    %v362 = vpow.pop %v361
    %v363 = vadd.f32 %v362, 1.0
    %v364 = vrcp.pop %v363
    %v365 = vmul.f32 1.0, %v364
    %v366 = vmul.f32 %v359, %v365
    %367 = vst [vmem:[#allocation12] sm:$0xff] %v366
    // Predicated region
    $region54: #{tpu_custom_call.1} parent=1 // pred_check
      _
    $region55: #{tpu_custom_call.1} parent=1 // pred_check_branch
      %369 = sbr.rel (0) target = $region57
    $region56: #{tpu_custom_call.1} parent=1 // pred_region
      %s371 = ssub.s32 128, 128
      %372 = vsyncadd [#allocation5], %s371
      %s374 = sshll.u32 [#allocation12], 4
      %s375 = int_to_ptr.vmem [resolvable:$true] %s374
      %377 = dma.vmem_to_hbm [thread:$0]  %s375, 128, %s7, [#allocation5]
    $region57: #{tpu_custom_call.1} parent=1 // pred_fallthru
      _
    // Predicated region
    $region58: #{tpu_custom_call.1} parent=1 // pred_check
      _
    $region59: #{tpu_custom_call.1} parent=1 // pred_check_branch
      %379 = sbr.rel (0) target = $region61
    $region60: #{tpu_custom_call.1} parent=1 // pred_region
      %380 = dma.done [#allocation5], 128
    $region61: #{tpu_custom_call.1} parent=1 // pred_fallthru
      _
    %381 = vsyncpa [#allocation4], 1
    %382 = vsyncpa [#allocation7], 1
    %383 = vsyncpa [#allocation10], 1
    %384 = vsyncpa [#allocation5], 1

// kernel: tpu_custom_call.1
$region0: #{tpu_custom_call.1}
  #allocation0 [shape = 'u32[]', space=smem, size = 0x4, offset = 0x4, fixed_abs, tag = 'smem constant byte address 0x4 - core index']
  #allocation1 [shape = 'u32[144,128]{1,0:T(1,128)}', space=vmem, size = 0x12000, scoped, tag = 'internal scratch']
  #allocation2 [shape = 'f32[8,128]{1,0:T(8,128)}', space=vmem, size = 0x1000, scoped, tag = 'scratch operand']
  %s0 = inlined_call_operand.hbm [shape: f32[8,32], index: 0, kind: input, shape index: {}]
  %s1 = inlined_call_operand.hbm [shape: f32[8,32], index: 1, kind: input, shape index: {}]
  %s2 = inlined_call_operand.hbm [shape: f32[32,128], index: 2, kind: input, shape index: {}]
  %s3 = inlined_call_operand.hbm [shape: f32[32,128], index: 3, kind: input, shape index: {}]
  %s4 = inlined_call_operand.vmem [shape: f32[1,128], index: 4, kind: input, shape index: {}]
  %s5 = inlined_call_operand.hbm [shape: f32[128,128], index: 5, kind: input, shape index: {}]
  %s6 = inlined_call_operand.vmem [shape: f32[1,128], index: 6, kind: input, shape index: {}]
  %s7 = inlined_call_operand.hbm [shape: f32[8,128], index: 7, kind: output, shape index: {}]
  %s8 = sld [smem:[#allocation0]]
  $region62: #{tpu_custom_call.1} parent=0
    _
  %s10 = ssub.s32 1, %s8
  %s11 = scalar_select 0, %s10, %s8
  $region1: #{tpu_custom_call.1} parent=0
    #allocation3 [shape = 'u8[4096]{0}', space=vmem, size = 0x1000, scoped, tag = 'input window, operand 0, single buffered']
    #allocation4 [shape = 's32[1]{0}', space=sflag, size = 0x4, scoped, tag = 'scoped memory for tpu_custom_call.1']
    #allocation5 [shape = 's32[1]{0}', space=sflag, size = 0x4, scoped, tag = 'scoped memory for tpu_custom_call.1']
    #allocation6 [shape = 'u8[4096]{0}', space=vmem, size = 0x1000, scoped, tag = 'input window, operand 1, single buffered']
    #allocation7 [shape = 's32[1]{0}', space=sflag, size = 0x4, scoped, tag = 'scoped memory for tpu_custom_call.1']
    #allocation8 [shape = 'u8[16384]{0}', space=vmem, size = 0x4000, scoped, tag = 'input window, operand 2, single buffered']
    #allocation9 [shape = 'u8[16384]{0}', space=vmem, size = 0x4000, scoped, tag = 'input window, operand 3, single buffered']
    #allocation10 [shape = 's32[1]{0}', space=sflag, size = 0x4, scoped, tag = 'scoped memory for tpu_custom_call.1']
    #allocation11 [shape = 'u8[65536]{0}', space=vmem, size = 0x10000, scoped, tag = 'input window, operand 5, single buffered']
    #allocation12 [shape = 'u8[4096]{0}', space=vmem, size = 0x1000, scoped, tag = 'output window, operand 0, single buffered']
    %12 = vsyncpa [#allocation4], 0
    %13 = vsyncpa [#allocation7], 0
    %14 = vsyncpa [#allocation10], 0
    %15 = vsyncpa [#allocation5], 0
    // Predicated region
    $region2: #{tpu_custom_call.1} parent=1 // pred_check
      _
    $region3: #{tpu_custom_call.1} parent=1 // pred_check_branch
      %17 = sbr.rel (0) target = $region5
    $region4: #{tpu_custom_call.1} parent=1 // pred_region
      %s19 = ssub.s32 128, 128
      %20 = vsyncadd [#allocation4], %s19
      %s22 = sshll.u32 [#allocation3], 4
      %s23 = int_to_ptr.vmem [resolvable:$true] %s22
      %25 = dma.hbm_to_vmem [thread:$0]  %s0, 128, %s23, [#allocation4]
    $region5: #{tpu_custom_call.1} parent=1 // pred_fallthru
      _
    // Predicated region
    $region6: #{tpu_custom_call.1} parent=1 // pred_check
      _
    $region7: #{tpu_custom_call.1} parent=1 // pred_check_branch
      %27 = sbr.rel (0) target = $region9
    $region8: #{tpu_custom_call.1} parent=1 // pred_region
      %s29 = ssub.s32 128, 128
      %30 = vsyncadd [#allocation7], %s29
      %s32 = sshll.u32 [#allocation6], 4
      %s33 = int_to_ptr.vmem [resolvable:$true] %s32
      %35 = dma.hbm_to_vmem [thread:$0]  %s1, 128, %s33, [#allocation7]
    $region9: #{tpu_custom_call.1} parent=1 // pred_fallthru
      _
    // Predicated region
    $region10: #{tpu_custom_call.1} parent=1 // pred_check
      _
    $region11: #{tpu_custom_call.1} parent=1 // pred_check_branch
      %37 = sbr.rel (0) target = $region13
    $region12: #{tpu_custom_call.1} parent=1 // pred_region
      %s39 = ssub.s32 512, 512
      %40 = vsyncadd [#allocation7], %s39
      %s41 = sshll.u32 [#allocation8], 4
      %s42 = int_to_ptr.vmem [resolvable:$true] %s41
      %47 = dma.hbm_to_vmem [thread:$0]  %s2, 512, %s42, [#allocation7], 128, 128, 8
    $region13: #{tpu_custom_call.1} parent=1 // pred_fallthru
      _
    // Predicated region
    $region14: #{tpu_custom_call.1} parent=1 // pred_check
      _
    $region15: #{tpu_custom_call.1} parent=1 // pred_check_branch
      %49 = sbr.rel (0) target = $region17
    $region16: #{tpu_custom_call.1} parent=1 // pred_region
      %s51 = ssub.s32 512, 512
      %52 = vsyncadd [#allocation10], %s51
      %s53 = sshll.u32 [#allocation9], 4
      %s54 = int_to_ptr.vmem [resolvable:$true] %s53
      %59 = dma.hbm_to_vmem [thread:$0]  %s3, 512, %s54, [#allocation10], 128, 128, 8
    $region17: #{tpu_custom_call.1} parent=1 // pred_fallthru
      _
    // Predicated region
    $region18: #{tpu_custom_call.1} parent=1 // pred_check
      _
    $region19: #{tpu_custom_call.1} parent=1 // pred_check_branch
      %61 = sbr.rel (0) target = $region21
    $region20: #{tpu_custom_call.1} parent=1 // pred_region
      _
    $region21: #{tpu_custom_call.1} parent=1 // pred_fallthru
      _
    // Predicated region
    $region22: #{tpu_custom_call.1} parent=1 // pred_check
      _
    $region23: #{tpu_custom_call.1} parent=1 // pred_check_branch
      %63 = sbr.rel (0) target = $region25
    $region24: #{tpu_custom_call.1} parent=1 // pred_region
      %s65 = ssub.s32 2048, 2048
      %66 = vsyncadd [#allocation10], %s65
      %s67 = sshll.u32 [#allocation11], 4
      %s68 = int_to_ptr.vmem [resolvable:$true] %s67
      %73 = dma.hbm_to_vmem [thread:$0]  %s5, 2048, %s68, [#allocation10], 128, 128, 8
    $region25: #{tpu_custom_call.1} parent=1 // pred_fallthru
      _
    // Predicated region
    $region26: #{tpu_custom_call.1} parent=1 // pred_check
      _
    $region27: #{tpu_custom_call.1} parent=1 // pred_check_branch
      %75 = sbr.rel (0) target = $region29
    $region28: #{tpu_custom_call.1} parent=1 // pred_region
      _
    $region29: #{tpu_custom_call.1} parent=1 // pred_fallthru
      _
    // Predicated region
    $region30: #{tpu_custom_call.1} parent=1 // pred_check
      _
    $region31: #{tpu_custom_call.1} parent=1 // pred_check_branch
      %77 = sbr.rel (0) target = $region33
    $region32: #{tpu_custom_call.1} parent=1 // pred_region
      %78 = dma.done [#allocation4], 128
    $region33: #{tpu_custom_call.1} parent=1 // pred_fallthru
      _
    // Predicated region
    $region34: #{tpu_custom_call.1} parent=1 // pred_check
      _
    $region35: #{tpu_custom_call.1} parent=1 // pred_check_branch
      %80 = sbr.rel (0) target = $region37
    $region36: #{tpu_custom_call.1} parent=1 // pred_region
      %81 = dma.done [#allocation7], 128
    $region37: #{tpu_custom_call.1} parent=1 // pred_fallthru
      _
    // Predicated region
    $region38: #{tpu_custom_call.1} parent=1 // pred_check
      _
    $region39: #{tpu_custom_call.1} parent=1 // pred_check_branch
      %83 = sbr.rel (0) target = $region41
    $region40: #{tpu_custom_call.1} parent=1 // pred_region
      %84 = dma.done [#allocation7], 512
    $region41: #{tpu_custom_call.1} parent=1 // pred_fallthru
      _
    // Predicated region
    $region42: #{tpu_custom_call.1} parent=1 // pred_check
      _
    $region43: #{tpu_custom_call.1} parent=1 // pred_check_branch
      %86 = sbr.rel (0) target = $region45
    $region44: #{tpu_custom_call.1} parent=1 // pred_region
      %87 = dma.done [#allocation10], 512
    $region45: #{tpu_custom_call.1} parent=1 // pred_fallthru
      _
    // Predicated region
    $region46: #{tpu_custom_call.1} parent=1 // pred_check
      _
    $region47: #{tpu_custom_call.1} parent=1 // pred_check_branch
      %89 = sbr.rel (0) target = $region49
    $region48: #{tpu_custom_call.1} parent=1 // pred_region
      %90 = dma.done [#allocation10], 2048
    $region49: #{tpu_custom_call.1} parent=1 // pred_fallthru
      _
    %p91 = scmp.eq.s32.totalorder 0, 0
    // Predicated region
    $region50: #{tpu_custom_call.1} parent=1 // pred_check
      %p92 = pneg %p91
    $region51: #{tpu_custom_call.1} parent=1 // pred_check_branch
      %94 = sbr.rel (%p92) target = $region53
    $region52: #{tpu_custom_call.1} parent=1 // pred_region
      %v95 = vld [vmem:[#allocation3] sm:$0xff]
      %v96 = vld [vmem:[#allocation8] sm:$0xff]
      %v97 = vld [vmem:[#allocation8 + $0x8] sm:$0xff]
      %v98 = vld [vmem:[#allocation8 + $0x10] sm:$0xff]
      %v99 = vld [vmem:[#allocation8 + $0x18] sm:$0xff]
      %v100 = vld [vmem:[#allocation6] sm:$0xff]
      %v101 = vld [vmem:[#allocation9] sm:$0xff]
      %v102 = vld [vmem:[#allocation9 + $0x8] sm:$0xff]
      %v103 = vld [vmem:[#allocation9 + $0x10] sm:$0xff]
      %v104 = vld [vmem:[#allocation9 + $0x18] sm:$0xff]
      %vm105 = vcmask 261120
      %v107 = vsel %vm105, %v100, 0
      %109 = vmatprep.subr.mxu0 0.0
      %110 = vmatpush1.msra.mxu0 0.0
      %111 = vmatprep.subr.mxu0 0.0
      %112 = vmatpush1.msra.mxu0 0.0
      %113 = vmatprep.subr.mxu0 0.0
      %114 = vmatpush1.msra.mxu0 0.0
      %115 = vmatprep.subr.mxu0 0.0
      %116 = vmatpush1.msra.mxu0 0.0
      %117 = vmatprep.subr.mxu0 0.0
      %118 = vmatpush1.msra.mxu0 0.0
      %119 = vmatprep.subr.mxu0 0.0
      %120 = vmatpush1.msra.mxu0 0.0
      %121 = vmatprep.subr.mxu0 0.0
      %122 = vmatpush1.msra.mxu0 0.0
      %123 = vmatprep.subr.mxu0 0.0
      %124 = vmatpush1.msra.mxu0 0.0
      %125 = vmatprep.subr.mxu0 0.0
      %126 = vmatpush1.msra.mxu0 0.0
      %127 = vmatprep.subr.mxu0 0.0
      %128 = vmatpush1.msra.mxu0 0.0
      %129 = vmatprep.subr.mxu0 0.0
      %130 = vmatpush1.msra.mxu0 0.0
      %131 = vmatprep.subr.mxu0 0.0
      %132 = vmatpush1.msra.mxu0 0.0
      %133 = vmatprep.subr.mxu0 0.0
      %134 = vmatpush1.msra.mxu0 %v104
      %135 = vmatprep.subr.mxu0 0.0
      %136 = vmatpush1.msra.mxu0 %v103
      %137 = vmatprep.subr.mxu0 0.0
      %138 = vmatpush1.msra.mxu0 %v102
      %139 = vmatprep.subr.mxu0 0.0
      %140 = vmatpush1.msra.mxu0 %v101
      %141 = vmatprep.subr.mxu0 0.0
      %142 = vmatpush2.msra.mxu0 0.0
      %143 = vmatprep.subr.mxu0 0.0
      %144 = vmatpush2.msra.mxu0 0.0
      %145 = vmatprep.subr.mxu0 0.0
      %146 = vmatpush2.msra.mxu0 0.0
      %147 = vmatprep.subr.mxu0 0.0
      %148 = vmatpush2.msra.mxu0 0.0
      %149 = vmatprep.subr.mxu0 0.0
      %150 = vmatpush2.msra.mxu0 0.0
      %151 = vmatprep.subr.mxu0 0.0
      %152 = vmatpush2.msra.mxu0 0.0
      %153 = vmatprep.subr.mxu0 0.0
      %154 = vmatpush2.msra.mxu0 0.0
      %155 = vmatprep.subr.mxu0 0.0
      %156 = vmatpush2.msra.mxu0 0.0
      %157 = vmatprep.subr.mxu0 0.0
      %158 = vmatpush2.msra.mxu0 0.0
      %159 = vmatprep.subr.mxu0 0.0
      %160 = vmatpush2.msra.mxu0 0.0
      %161 = vmatprep.subr.mxu0 0.0
      %162 = vmatpush2.msra.mxu0 0.0
      %163 = vmatprep.subr.mxu0 0.0
      %164 = vmatpush2.msra.mxu0 0.0
      %165 = vmatprep.subr.mxu0 0.0
      %166 = vmatpush2.msra.mxu0 0.0
      %167 = vmatprep.subr.mxu0 0.0
      %168 = vmatpush2.msra.mxu0 0.0
      %169 = vmatprep.subr.mxu0 0.0
      %170 = vmatpush2.msra.mxu0 0.0
      %171 = vmatprep.subr.mxu0 0.0
      %172 = vmatpush2.msra.mxu0 0.0
      %173 = vmatprep.mubr.f32.mxu0 0.0
      %174 = vmatmul.mubr.f32.gmra.mxu0 %v107
      %v175 = vpop.f32.mrf.mxu0
      %v176 = vadd.f32 0.0, %v175
      %v177 = vpop.f32.mrf.mxu0
      %178 = vdwg.mxu0
      %v180 = vsel %vm105, %v95, 0
      %182 = vmatprep.subr.mxu0 0.0
      %183 = vmatpush1.msra.mxu0 0.0
      %184 = vmatprep.subr.mxu0 0.0
      %185 = vmatpush1.msra.mxu0 0.0
      %186 = vmatprep.subr.mxu0 0.0
      %187 = vmatpush1.msra.mxu0 0.0
      %188 = vmatprep.subr.mxu0 0.0
      %189 = vmatpush1.msra.mxu0 0.0
      %190 = vmatprep.subr.mxu0 0.0
      %191 = vmatpush1.msra.mxu0 0.0
      %192 = vmatprep.subr.mxu0 0.0
      %193 = vmatpush1.msra.mxu0 0.0
      %194 = vmatprep.subr.mxu0 0.0
      %195 = vmatpush1.msra.mxu0 0.0
      %196 = vmatprep.subr.mxu0 0.0
      %197 = vmatpush1.msra.mxu0 0.0
      %198 = vmatprep.subr.mxu0 0.0
      %199 = vmatpush1.msra.mxu0 0.0
      %200 = vmatprep.subr.mxu0 0.0
      %201 = vmatpush1.msra.mxu0 0.0
      %202 = vmatprep.subr.mxu0 0.0
      %203 = vmatpush1.msra.mxu0 0.0
      %204 = vmatprep.subr.mxu0 0.0
      %205 = vmatpush1.msra.mxu0 0.0
      %206 = vmatprep.subr.mxu0 0.0
      %207 = vmatpush1.msra.mxu0 %v99
      %208 = vmatprep.subr.mxu0 0.0
      %209 = vmatpush1.msra.mxu0 %v98
      %210 = vmatprep.subr.mxu0 0.0
      %211 = vmatpush1.msra.mxu0 %v97
      %212 = vmatprep.subr.mxu0 0.0
      %213 = vmatpush1.msra.mxu0 %v96
      %214 = vmatprep.subr.mxu0 0.0
      %215 = vmatpush2.msra.mxu0 0.0
      %216 = vmatprep.subr.mxu0 0.0
      %217 = vmatpush2.msra.mxu0 0.0
      %218 = vmatprep.subr.mxu0 0.0
      %219 = vmatpush2.msra.mxu0 0.0
      %220 = vmatprep.subr.mxu0 0.0
      %221 = vmatpush2.msra.mxu0 0.0
      %222 = vmatprep.subr.mxu0 0.0
      %223 = vmatpush2.msra.mxu0 0.0
      %224 = vmatprep.subr.mxu0 0.0
      %225 = vmatpush2.msra.mxu0 0.0
      %226 = vmatprep.subr.mxu0 0.0
      %227 = vmatpush2.msra.mxu0 0.0
      %228 = vmatprep.subr.mxu0 0.0
      %229 = vmatpush2.msra.mxu0 0.0
      %230 = vmatprep.subr.mxu0 0.0
      %231 = vmatpush2.msra.mxu0 0.0
      %232 = vmatprep.subr.mxu0 0.0
      %233 = vmatpush2.msra.mxu0 0.0
      %234 = vmatprep.subr.mxu0 0.0
      %235 = vmatpush2.msra.mxu0 0.0
      %236 = vmatprep.subr.mxu0 0.0
      %237 = vmatpush2.msra.mxu0 0.0
      %238 = vmatprep.subr.mxu0 0.0
      %239 = vmatpush2.msra.mxu0 0.0
      %240 = vmatprep.subr.mxu0 0.0
      %241 = vmatpush2.msra.mxu0 0.0
      %242 = vmatprep.subr.mxu0 0.0
      %243 = vmatpush2.msra.mxu0 0.0
      %244 = vmatprep.subr.mxu0 0.0
      %245 = vmatpush2.msra.mxu0 0.0
      %246 = vmatprep.mubr.f32.mxu0 0.0
      %247 = vmatmul.mubr.f32.gmra.mxu0 %v180
      %v248 = vpop.f32.mrf.mxu0
      %v249 = vadd.f32 %v176, %v248
      %v250 = vpop.f32.mrf.mxu0
      %251 = vdwg.mxu0
      %v252 = vld [vmem:[%s4] sm:$0x1]
      %v254 = vlaneseq
      %v255 = vshrl.u32 %v254, 7
      %v256 = vsub.s32 0, %v255
      %v257 = vrot.slane %v252, %v256
      %v259 = vadd.f32 %v249, %v257
      %260 = vst [vmem:[#allocation2] sm:$0xff] %v259
    $region53: #{tpu_custom_call.1} parent=1 // pred_fallthru
      _
    %v261 = vld [vmem:[#allocation2] sm:$0xff]
    %v262 = vld [vmem:[#allocation11] sm:$0xff]
    %v263 = vld [vmem:[#allocation11 + $0x8] sm:$0xff]
    %v264 = vld [vmem:[#allocation11 + $0x10] sm:$0xff]
    %v265 = vld [vmem:[#allocation11 + $0x18] sm:$0xff]
    %v266 = vld [vmem:[#allocation11 + $0x20] sm:$0xff]
    %v267 = vld [vmem:[#allocation11 + $0x28] sm:$0xff]
    %v268 = vld [vmem:[#allocation11 + $0x30] sm:$0xff]
    %v269 = vld [vmem:[#allocation11 + $0x38] sm:$0xff]
    %v270 = vld [vmem:[#allocation11 + $0x40] sm:$0xff]
    %v271 = vld [vmem:[#allocation11 + $0x48] sm:$0xff]
    %v272 = vld [vmem:[#allocation11 + $0x50] sm:$0xff]
    %v273 = vld [vmem:[#allocation11 + $0x58] sm:$0xff]
    %v274 = vld [vmem:[#allocation11 + $0x60] sm:$0xff]
    %v275 = vld [vmem:[#allocation11 + $0x68] sm:$0xff]
    %v276 = vld [vmem:[#allocation11 + $0x70] sm:$0xff]
    %v277 = vld [vmem:[#allocation11 + $0x78] sm:$0xff]
    %v278 = vld [vmem:[%s6] sm:$0x1]
    %v280 = vlaneseq
    %v281 = vshrl.u32 %v280, 7
    %v282 = vsub.s32 0, %v281
    %v283 = vrot.slane %v278, %v282
    %285 = vmatprep.subr.mxu0 0.0
    %286 = vmatpush1.msra.mxu0 %v277
    %287 = vmatprep.subr.mxu0 0.0
    %288 = vmatpush1.msra.mxu0 %v276
    %289 = vmatprep.subr.mxu0 0.0
    %290 = vmatpush1.msra.mxu0 %v275
    %291 = vmatprep.subr.mxu0 0.0
    %292 = vmatpush1.msra.mxu0 %v274
    %293 = vmatprep.subr.mxu0 0.0
    %294 = vmatpush1.msra.mxu0 %v273
    %295 = vmatprep.subr.mxu0 0.0
    %296 = vmatpush1.msra.mxu0 %v272
    %297 = vmatprep.subr.mxu0 0.0
    %298 = vmatpush1.msra.mxu0 %v271
    %299 = vmatprep.subr.mxu0 0.0
    %300 = vmatpush1.msra.mxu0 %v270
    %301 = vmatprep.subr.mxu0 0.0
    %302 = vmatpush1.msra.mxu0 %v269
    %303 = vmatprep.subr.mxu0 0.0
    %304 = vmatpush1.msra.mxu0 %v268
    %305 = vmatprep.subr.mxu0 0.0
    %306 = vmatpush1.msra.mxu0 %v267
    %307 = vmatprep.subr.mxu0 0.0
    %308 = vmatpush1.msra.mxu0 %v266
    %309 = vmatprep.subr.mxu0 0.0
    %310 = vmatpush1.msra.mxu0 %v265
    %311 = vmatprep.subr.mxu0 0.0
    %312 = vmatpush1.msra.mxu0 %v264
    %313 = vmatprep.subr.mxu0 0.0
    %314 = vmatpush1.msra.mxu0 %v263
    %315 = vmatprep.subr.mxu0 0.0
    %316 = vmatpush1.msra.mxu0 %v262
    %317 = vmatprep.subr.mxu0 0.0
    %318 = vmatpush2.msra.mxu0 0.0
    %319 = vmatprep.subr.mxu0 0.0
    %320 = vmatpush2.msra.mxu0 0.0
    %321 = vmatprep.subr.mxu0 0.0
    %322 = vmatpush2.msra.mxu0 0.0
    %323 = vmatprep.subr.mxu0 0.0
    %324 = vmatpush2.msra.mxu0 0.0
    %325 = vmatprep.subr.mxu0 0.0
    %326 = vmatpush2.msra.mxu0 0.0
    %327 = vmatprep.subr.mxu0 0.0
    %328 = vmatpush2.msra.mxu0 0.0
    %329 = vmatprep.subr.mxu0 0.0
    %330 = vmatpush2.msra.mxu0 0.0
    %331 = vmatprep.subr.mxu0 0.0
    %332 = vmatpush2.msra.mxu0 0.0
    %333 = vmatprep.subr.mxu0 0.0
    %334 = vmatpush2.msra.mxu0 0.0
    %335 = vmatprep.subr.mxu0 0.0
    %336 = vmatpush2.msra.mxu0 0.0
    %337 = vmatprep.subr.mxu0 0.0
    %338 = vmatpush2.msra.mxu0 0.0
    %339 = vmatprep.subr.mxu0 0.0
    %340 = vmatpush2.msra.mxu0 0.0
    %341 = vmatprep.subr.mxu0 0.0
    %342 = vmatpush2.msra.mxu0 0.0
    %343 = vmatprep.subr.mxu0 0.0
    %344 = vmatpush2.msra.mxu0 0.0
    %345 = vmatprep.subr.mxu0 0.0
    %346 = vmatpush2.msra.mxu0 0.0
    %347 = vmatprep.subr.mxu0 0.0
    %348 = vmatpush2.msra.mxu0 0.0
    %349 = vmatprep.mubr.f32.mxu0 0.0
    %350 = vmatmul.mubr.f32.gmra.mxu0 %v261
    %v351 = vpop.f32.mrf.mxu0
    %v352 = vadd.f32 %v283, %v351
    %v353 = vpop.f32.mrf.mxu0
    %354 = vdwg.mxu0
    %s355 = smul.u32 0, 128
    %s356 = sshra.s32 %s355, 7
    %s357 = sand.u32 %s355, 127
    %s358 = scalar_lea.vmem [#allocation2], %s356
    %v359 = vld [vmem:[%s358] sm:$0xff]
    %v360 = vxor.u32 %v352, 2147483648
    %v361 = vmul.f32 %v360, 1.442695
    %v362 = vpow.pop %v361
    %v363 = vadd.f32 %v362, 1.0
    %v364 = vrcp.pop %v363
    %v365 = vmul.f32 1.0, %v364
    %v366 = vmul.f32 %v359, %v365
    %367 = vst [vmem:[#allocation12] sm:$0xff] %v366
    // Predicated region
    $region54: #{tpu_custom_call.1} parent=1 // pred_check
      _
    $region55: #{tpu_custom_call.1} parent=1 // pred_check_branch
      %369 = sbr.rel (0) target = $region57
    $region56: #{tpu_custom_call.1} parent=1 // pred_region
      %s371 = ssub.s32 128, 128
      %372 = vsyncadd [#allocation5], %s371
      %s374 = sshll.u32 [#allocation12], 4
      %s375 = int_to_ptr.vmem [resolvable:$true] %s374
      %377 = dma.vmem_to_hbm [thread:$0]  %s375, 128, %s7, [#allocation5]
    $region57: #{tpu_custom_call.1} parent=1 // pred_fallthru
      _
    // Predicated region
    $region58: #{tpu_custom_call.1} parent=1 // pred_check
      _
    $region59: #{tpu_custom_call.1} parent=1 // pred_check_branch
      %379 = sbr.rel (0) target = $region61
    $region60: #{tpu_custom_call.1} parent=1 // pred_region
      %380 = dma.done [#allocation5], 128
    $region61: #{tpu_custom_call.1} parent=1 // pred_fallthru
      _
    %381 = vsyncpa [#allocation4], 1
    %382 = vsyncpa [#allocation7], 1
    %383 = vsyncpa [#allocation10], 1
    %384 = vsyncpa [#allocation5], 1

</llo_original>
